<compile_context>
chip_gen: v7x
topology: tpu7x:2x2x1
jax: 0.10.0
libtpu: 0.0.40
codegen_flags: <defaults>
</compile_context>

<pallas_src>
import jax
import jax.numpy as jnp
from jax.experimental import pallas as pl
from jax.experimental.pallas import tpu as pltpu


def _round_up(x, m):
    return (x + m - 1) // m * m


def _mlp_kernel(x_ref,
                w1_ref, b1_ref,
                w2_ref, b2_ref,
                w3_ref, b3_ref,
                w4_ref, b4_ref,
                w5_ref, b5_ref,
                o_ref):
    """Whole MLP forward for one batch tile, fused in VMEM."""

    def layer(h, w_ref, b_ref, relu):
        # Cast lhs to the weight dtype (no-op for f32, enables bf16 MXU path),
        # accumulate in f32, do the bias-add / ReLU epilogue in f32.
        y = jnp.dot(h.astype(w_ref.dtype), w_ref[...],
                    preferred_element_type=jnp.float32)
        y = y + b_ref[...].astype(jnp.float32)
        return jnp.maximum(y, 0.0) if relu else y

    h = x_ref[...].astype(jnp.float32)
    h = layer(h, w1_ref, b1_ref, True)    # in   -> 512
    h = layer(h, w2_ref, b2_ref, True)    # 512  -> 256
    h = layer(h, w3_ref, b3_ref, True)    # 256  -> 128
    h = layer(h, w4_ref, b4_ref, True)    # 128  -> 64  (padded to 128)
    out = layer(h, w5_ref, b5_ref, False) # 64   -> out (padded to 128)
    o_ref[...] = out.astype(o_ref.dtype)


def mlp_forward(x, params, *, batch_tile=512, weights_dtype=None):
    """x: [B, input_size] float32. params: list of (W[in, out], b[1, out])."""
    B, in_features = x.shape
    out_size = params[-1][0].shape[1]

    # ---- pad narrow feature dims (64-wide hidden, out_size output) to 128 ----
    padded = []
    prev_out_pad = in_features           # x itself is left unpadded (K=32 is fine)
    for (w, b) in params:
        k, n = w.shape
        k_pad = prev_out_pad             # matches (padded) output of previous layer
        n_pad = max(n, _round_up(n, 128))
        w_p = jnp.zeros((k_pad, n_pad), w.dtype).at[:k, :n].set(w)
        b_p = jnp.zeros((1, n_pad), b.dtype).at[:, :n].set(b)
        if weights_dtype is not None:
            w_p = w_p.astype(weights_dtype)   # biases stay f32 (added post-MXU)
        padded.append((w_p, b_p))
        prev_out_pad = n_pad
    out_pad = prev_out_pad

    # ---- batch tiling (multiple of 8, clamped for small batches) ----
    bt = _round_up(min(batch_tile, _round_up(B, 8)), 8)
    grid = (pl.cdiv(B, bt),)

    in_specs = [pl.BlockSpec((bt, in_features), lambda i: (i, 0))]
    flat_params = []
    for (w, b) in padded:
        in_specs.append(pl.BlockSpec(w.shape, lambda i: (0, 0)))
        in_specs.append(pl.BlockSpec(b.shape, lambda i: (0, 0)))
        flat_params.extend([w, b])

    out_specs = pl.BlockSpec((bt, out_pad), lambda i: (i, 0))

    flops = 2 * B * sum(int(w.shape[0]) * int(w.shape[1]) for w, _ in padded)
    bytes_accessed = (
        int(x.size) * x.dtype.itemsize
        + B * out_pad * 4
        + sum(int(w.size) * w.dtype.itemsize + int(b.size) * b.dtype.itemsize
              for w, b in padded)
    )

    out_padded = pl.pallas_call(
        _mlp_kernel,
        out_shape=jax.ShapeDtypeStruct((B, out_pad), jnp.float32),
        grid_spec=pltpu.PrefetchScalarGridSpec(
            num_scalar_prefetch=0,
            grid=grid,
            in_specs=in_specs,
            out_specs=out_specs,
        ),
        compiler_params=pltpu.CompilerParams(
            dimension_semantics=("parallel",)),
        cost_estimate=pl.CostEstimate(
            flops=flops, transcendentals=0, bytes_accessed=bytes_accessed),
    )(x, *flat_params)

    return out_padded[:, :out_size]


def init_mlp_params(key, input_size, output_size):
    """Deterministic init matching the PyTorch layer shapes.

    PyTorch Linear(in, out) has weight [out, in]; we store W as [in, out]
    so the kernel can compute x @ W directly.
    """
    dims = [input_size, 512, 256, 128, 64, output_size]
    params = []
    for i in range(len(dims) - 1):
        fan_in, fan_out = dims[i], dims[i + 1]
        key, wk, bk = jax.random.split(key, 3)
        bound = 1.0 / (fan_in ** 0.5)  # same bound PyTorch uses
        w = jax.random.uniform(wk, (fan_in, fan_out), jnp.float32, -bound, bound)
        b = jax.random.uniform(bk, (1, fan_out), jnp.float32, -bound, bound)
        params.append((w, b))
    return params


def mlp_reference(x, params):
    """Pure-JAX reference for correctness checking."""
    h = x
    for i, (w, b) in enumerate(params):
        h = h @ w + b
        if i < len(params) - 1:
            h = jnp.maximum(h, 0.0)
    return h


if __name__ == "__main__":
    key = jax.random.PRNGKey(0)

    input_size = 32
    output_size = 16

    pkey, xkey, xkey2 = jax.random.split(key, 3)
    params = init_mlp_params(pkey, input_size, output_size)

    # 1) small batch, f32 weights (tight tolerance)
    x = jax.random.normal(xkey, (8, input_size), jnp.float32)
    out = jax.block_until_ready(mlp_forward(x, params))
    ref = mlp_reference(x, params)
    assert out.shape == (8, output_size)
    assert jnp.allclose(out, ref, atol=1e-4, rtol=1e-4), "f32 mismatch vs reference"

    # 2) batch not a multiple of the tile (exercises boundary blocks)
    x2 = jax.random.normal(xkey2, (24, input_size), jnp.float32)
    out2 = jax.block_until_ready(mlp_forward(x2, params, batch_tile=16))
    ref2 = mlp_reference(x2, params)
    assert out2.shape == (24, output_size)
    assert jnp.allclose(out2, ref2, atol=1e-4, rtol=1e-4), "boundary mismatch"

    # 3) bf16 weights (looser tolerance; f32 accumulation keeps this tight-ish)
    out3 = jax.block_until_ready(
        mlp_forward(x, params, weights_dtype=jnp.bfloat16))
    assert out3.shape == (8, output_size)
    assert jnp.allclose(out3, ref, atol=5e-2, rtol=5e-2), "bf16 mismatch"

    print("KERNEL_OK")
</pallas_src>

<mosaic_0001>
module attributes {stable_mosaic.version = 11 : i64} {
  func.func @_mlp_kernel(%arg0: i32, %arg1: memref<8x32xf32, #tpu.memory_space<vmem>>, %arg2: memref<32x512xf32, #tpu.memory_space<vmem>>, %arg3: memref<1x512xf32, #tpu.memory_space<vmem>>, %arg4: memref<512x256xf32, #tpu.memory_space<vmem>>, %arg5: memref<1x256xf32, #tpu.memory_space<vmem>>, %arg6: memref<256x128xf32, #tpu.memory_space<vmem>>, %arg7: memref<1x128xf32, #tpu.memory_space<vmem>>, %arg8: memref<128x128xf32, #tpu.memory_space<vmem>>, %arg9: memref<1x128xf32, #tpu.memory_space<vmem>>, %arg10: memref<128x128xf32, #tpu.memory_space<vmem>>, %arg11: memref<1x128xf32, #tpu.memory_space<vmem>>, %arg12: memref<8x128xf32, #tpu.memory_space<vmem>>) attributes {dimension_semantics = [#tpu.dimension_semantics<parallel>], iteration_bounds = array<i64: 1>, scalar_prefetch = 0 : i64, scratch_operands = 0 : i64, tpu.core_type = #tpu.core_type<tc>, window_params = [{transform_indices = @transform_0, window_bounds = array<i64: 8, 32>}, {pipeline_mode = #tpu.pipeline_mode<synchronous>, transform_indices = @transform_1, window_bounds = array<i64: 32, 512>}, {pipeline_mode = #tpu.pipeline_mode<synchronous>, transform_indices = @transform_2, window_bounds = array<i64: 1, 512>}, {pipeline_mode = #tpu.pipeline_mode<synchronous>, transform_indices = @transform_3, window_bounds = array<i64: 512, 256>}, {pipeline_mode = #tpu.pipeline_mode<synchronous>, transform_indices = @transform_4, window_bounds = array<i64: 1, 256>}, {pipeline_mode = #tpu.pipeline_mode<synchronous>, transform_indices = @transform_5, window_bounds = array<i64: 256, 128>}, {pipeline_mode = #tpu.pipeline_mode<synchronous>, transform_indices = @transform_6, window_bounds = array<i64: 1, 128>}, {pipeline_mode = #tpu.pipeline_mode<synchronous>, transform_indices = @transform_7, window_bounds = array<i64: 128, 128>}, {pipeline_mode = #tpu.pipeline_mode<synchronous>, transform_indices = @transform_8, window_bounds = array<i64: 1, 128>}, {pipeline_mode = #tpu.pipeline_mode<synchronous>, transform_indices = @transform_9, window_bounds = array<i64: 128, 128>}, {pipeline_mode = #tpu.pipeline_mode<synchronous>, transform_indices = @transform_10, window_bounds = array<i64: 1, 128>}, {transform_indices = @transform_11, window_bounds = array<i64: 8, 128>}]} {
    %c0 = arith.constant 0 : index
    %c0_0 = arith.constant 0 : index
    %0 = vector.load %arg1[%c0, %c0_0] : memref<8x32xf32, #tpu.memory_space<vmem>>, vector<8x32xf32>
    %c0_1 = arith.constant 0 : index
    %c0_2 = arith.constant 0 : index
    %1 = vector.load %arg2[%c0_1, %c0_2] : memref<32x512xf32, #tpu.memory_space<vmem>>, vector<32x512xf32>
    %cst = arith.constant dense<0.000000e+00> : vector<8x512xf32>
    %2 = tpu.matmul %0, %1, %cst {dimension_numbers = #tpu.dot_dimension_numbers<[1], [0], [0], [1], [0, 0, 1, 1], [], []>} : vector<8x32xf32>, vector<32x512xf32>, vector<8x512xf32> -> vector<8x512xf32>
    %c0_3 = arith.constant 0 : index
    %c0_4 = arith.constant 0 : index
    %3 = vector.load %arg3[%c0_3, %c0_4] : memref<1x512xf32, #tpu.memory_space<vmem>>, vector<1x512xf32>
    %4 = vector.broadcast %3 : vector<1x512xf32> to vector<8x512xf32>
    %5 = arith.addf %2, %4 : vector<8x512xf32>
    %cst_5 = arith.constant 0.000000e+00 : f32
    %6 = vector.broadcast %cst_5 : f32 to vector<8x512xf32>
    %7 = arith.maximumf %5, %6 : vector<8x512xf32>
    %c0_6 = arith.constant 0 : index
    %c0_7 = arith.constant 0 : index
    %8 = vector.load %arg4[%c0_6, %c0_7] : memref<512x256xf32, #tpu.memory_space<vmem>>, vector<512x256xf32>
    %cst_8 = arith.constant dense<0.000000e+00> : vector<8x256xf32>
    %9 = tpu.matmul %7, %8, %cst_8 {dimension_numbers = #tpu.dot_dimension_numbers<[1], [0], [0], [1], [0, 0, 1, 1], [], []>} : vector<8x512xf32>, vector<512x256xf32>, vector<8x256xf32> -> vector<8x256xf32>
    %c0_9 = arith.constant 0 : index
    %c0_10 = arith.constant 0 : index
    %10 = vector.load %arg5[%c0_9, %c0_10] : memref<1x256xf32, #tpu.memory_space<vmem>>, vector<1x256xf32>
    %11 = vector.broadcast %10 : vector<1x256xf32> to vector<8x256xf32>
    %12 = arith.addf %9, %11 : vector<8x256xf32>
    %cst_11 = arith.constant 0.000000e+00 : f32
    %13 = vector.broadcast %cst_11 : f32 to vector<8x256xf32>
    %14 = arith.maximumf %12, %13 : vector<8x256xf32>
    %c0_12 = arith.constant 0 : index
    %c0_13 = arith.constant 0 : index
    %15 = vector.load %arg6[%c0_12, %c0_13] : memref<256x128xf32, #tpu.memory_space<vmem>>, vector<256x128xf32>
    %cst_14 = arith.constant dense<0.000000e+00> : vector<8x128xf32>
    %16 = tpu.matmul %14, %15, %cst_14 {dimension_numbers = #tpu.dot_dimension_numbers<[1], [0], [0], [1], [0, 0, 1, 1], [], []>} : vector<8x256xf32>, vector<256x128xf32>, vector<8x128xf32> -> vector<8x128xf32>
    %c0_15 = arith.constant 0 : index
    %c0_16 = arith.constant 0 : index
    %17 = vector.load %arg7[%c0_15, %c0_16] : memref<1x128xf32, #tpu.memory_space<vmem>>, vector<1x128xf32>
    %18 = vector.broadcast %17 : vector<1x128xf32> to vector<8x128xf32>
    %19 = arith.addf %16, %18 : vector<8x128xf32>
    %cst_17 = arith.constant 0.000000e+00 : f32
    %20 = vector.broadcast %cst_17 : f32 to vector<8x128xf32>
    %21 = arith.maximumf %19, %20 : vector<8x128xf32>
    %c0_18 = arith.constant 0 : index
    %c0_19 = arith.constant 0 : index
    %22 = vector.load %arg8[%c0_18, %c0_19] : memref<128x128xf32, #tpu.memory_space<vmem>>, vector<128x128xf32>
    %cst_20 = arith.constant dense<0.000000e+00> : vector<8x128xf32>
    %23 = tpu.matmul %21, %22, %cst_20 {dimension_numbers = #tpu.dot_dimension_numbers<[1], [0], [0], [1], [0, 0, 1, 1], [], []>} : vector<8x128xf32>, vector<128x128xf32>, vector<8x128xf32> -> vector<8x128xf32>
    %c0_21 = arith.constant 0 : index
    %c0_22 = arith.constant 0 : index
    %24 = vector.load %arg9[%c0_21, %c0_22] : memref<1x128xf32, #tpu.memory_space<vmem>>, vector<1x128xf32>
    %25 = vector.broadcast %24 : vector<1x128xf32> to vector<8x128xf32>
    %26 = arith.addf %23, %25 : vector<8x128xf32>
    %cst_23 = arith.constant 0.000000e+00 : f32
    %27 = vector.broadcast %cst_23 : f32 to vector<8x128xf32>
    %28 = arith.maximumf %26, %27 : vector<8x128xf32>
    %c0_24 = arith.constant 0 : index
    %c0_25 = arith.constant 0 : index
    %29 = vector.load %arg10[%c0_24, %c0_25] : memref<128x128xf32, #tpu.memory_space<vmem>>, vector<128x128xf32>
    %cst_26 = arith.constant dense<0.000000e+00> : vector<8x128xf32>
    %30 = tpu.matmul %28, %29, %cst_26 {dimension_numbers = #tpu.dot_dimension_numbers<[1], [0], [0], [1], [0, 0, 1, 1], [], []>} : vector<8x128xf32>, vector<128x128xf32>, vector<8x128xf32> -> vector<8x128xf32>
    %c0_27 = arith.constant 0 : index
    %c0_28 = arith.constant 0 : index
    %31 = vector.load %arg11[%c0_27, %c0_28] : memref<1x128xf32, #tpu.memory_space<vmem>>, vector<1x128xf32>
    %32 = vector.broadcast %31 : vector<1x128xf32> to vector<8x128xf32>
    %33 = arith.addf %30, %32 : vector<8x128xf32>
    %c0_29 = arith.constant 0 : index
    %c0_30 = arith.constant 0 : index
    %34 = vector.load %arg12[%c0_29, %c0_30] : memref<8x128xf32, #tpu.memory_space<vmem>>, vector<8x128xf32>
    tpu.vector_store %arg12[%c0_29, %c0_30], %33 {strides = array<i32>} : memref<8x128xf32, #tpu.memory_space<vmem>>, vector<8x128xf32>,
    return
  }
  func.func @transform_0(%arg0: i32) -> (i32, i32) {
    %c0_i32 = arith.constant 0 : i32
    %c0_i32_0 = arith.constant 0 : i32
    return %arg0, %c0_i32 : i32, i32
  }
  func.func @transform_1(%arg0: i32) -> (i32, i32) {
    %c0_i32 = arith.constant 0 : i32
    %c0_i32_0 = arith.constant 0 : i32
    %c0_i32_1 = arith.constant 0 : i32
    return %c0_i32, %c0_i32_0 : i32, i32
  }
  func.func @transform_2(%arg0: i32) -> (i32, i32) {
    %c0_i32 = arith.constant 0 : i32
    %c0_i32_0 = arith.constant 0 : i32
    %c0_i32_1 = arith.constant 0 : i32
    return %c0_i32, %c0_i32_0 : i32, i32
  }
  func.func @transform_3(%arg0: i32) -> (i32, i32) {
    %c0_i32 = arith.constant 0 : i32
    %c0_i32_0 = arith.constant 0 : i32
    %c0_i32_1 = arith.constant 0 : i32
    return %c0_i32, %c0_i32_0 : i32, i32
  }
  func.func @transform_4(%arg0: i32) -> (i32, i32) {
    %c0_i32 = arith.constant 0 : i32
    %c0_i32_0 = arith.constant 0 : i32
    %c0_i32_1 = arith.constant 0 : i32
    return %c0_i32, %c0_i32_0 : i32, i32
  }
  func.func @transform_5(%arg0: i32) -> (i32, i32) {
    %c0_i32 = arith.constant 0 : i32
    %c0_i32_0 = arith.constant 0 : i32
    %c0_i32_1 = arith.constant 0 : i32
    return %c0_i32, %c0_i32_0 : i32, i32
  }
  func.func @transform_6(%arg0: i32) -> (i32, i32) {
    %c0_i32 = arith.constant 0 : i32
    %c0_i32_0 = arith.constant 0 : i32
    %c0_i32_1 = arith.constant 0 : i32
    return %c0_i32, %c0_i32_0 : i32, i32
  }
  func.func @transform_7(%arg0: i32) -> (i32, i32) {
    %c0_i32 = arith.constant 0 : i32
    %c0_i32_0 = arith.constant 0 : i32
    %c0_i32_1 = arith.constant 0 : i32
    return %c0_i32, %c0_i32_0 : i32, i32
  }
  func.func @transform_8(%arg0: i32) -> (i32, i32) {
    %c0_i32 = arith.constant 0 : i32
    %c0_i32_0 = arith.constant 0 : i32
    %c0_i32_1 = arith.constant 0 : i32
    return %c0_i32, %c0_i32_0 : i32, i32
  }
  func.func @transform_9(%arg0: i32) -> (i32, i32) {
    %c0_i32 = arith.constant 0 : i32
    %c0_i32_0 = arith.constant 0 : i32
    %c0_i32_1 = arith.constant 0 : i32
    return %c0_i32, %c0_i32_0 : i32, i32
  }
  func.func @transform_10(%arg0: i32) -> (i32, i32) {
    %c0_i32 = arith.constant 0 : i32
    %c0_i32_0 = arith.constant 0 : i32
    %c0_i32_1 = arith.constant 0 : i32
    return %c0_i32, %c0_i32_0 : i32, i32
  }
  func.func @transform_11(%arg0: i32) -> (i32, i32) {
    %c0_i32 = arith.constant 0 : i32
    %c0_i32_0 = arith.constant 0 : i32
    return %arg0, %c0_i32 : i32, i32
  }
}

</mosaic_0001>

<llo_original>
// kernel: tpu_custom_call.1
$region0: #{tpu_custom_call.1}
  #allocation0 [shape = 'u32[]', space=smem, size = 0x4, offset = 0x4, fixed_abs, tag = 'smem constant byte address 0x4 - core index']
  #allocation1 [shape = 'u32[144,128]{1,0:T(1,128)}', space=vmem, size = 0x12000, scoped, tag = 'internal scratch']
  %s0 = inlined_call_operand.hbm [shape: f32[8,32], index: 0, kind: input, shape index: {}]
  %s1 = inlined_call_operand.hbm [shape: f32[32,512], index: 1, kind: input, shape index: {}]
  %s2 = inlined_call_operand.vmem [shape: f32[1,512], index: 2, kind: input, shape index: {}]
  %s3 = inlined_call_operand.hbm [shape: f32[512,256], index: 3, kind: input, shape index: {}]
  %s4 = inlined_call_operand.vmem [shape: f32[1,256], index: 4, kind: input, shape index: {}]
  %s5 = inlined_call_operand.hbm [shape: f32[256,128], index: 5, kind: input, shape index: {}]
  %s6 = inlined_call_operand.vmem [shape: f32[1,128], index: 6, kind: input, shape index: {}]
  %s7 = inlined_call_operand.hbm [shape: f32[128,128], index: 7, kind: input, shape index: {}]
  %s8 = inlined_call_operand.vmem [shape: f32[1,128], index: 8, kind: input, shape index: {}]
  %s9 = inlined_call_operand.hbm [shape: f32[128,128], index: 9, kind: input, shape index: {}]
  %s10 = inlined_call_operand.vmem [shape: f32[1,128], index: 10, kind: input, shape index: {}]
  %s11 = inlined_call_operand.hbm [shape: f32[8,128], index: 11, kind: output, shape index: {}]
  %s12 = sld [smem:[#allocation0]]
  $region78: #{tpu_custom_call.1} parent=0
    _
  %s14 = ssub.s32 1, %s12
  %s15 = scalar_select 0, %s14, %s12
  $region1: #{tpu_custom_call.1} parent=0
    #allocation2 [shape = 'u8[4096]{0}', space=vmem, size = 0x1000, scoped, tag = 'input window, operand 0, single buffered']
    #allocation3 [shape = 's32[1]{0}', space=sflag, size = 0x4, scoped, tag = 'scoped memory for tpu_custom_call.1']
    #allocation4 [shape = 's32[1]{0}', space=sflag, size = 0x4, scoped, tag = 'scoped memory for tpu_custom_call.1']
    #allocation5 [shape = 'u8[65536]{0}', space=vmem, size = 0x10000, scoped, tag = 'input window, operand 1, single buffered']
    #allocation6 [shape = 's32[1]{0}', space=sflag, size = 0x4, scoped, tag = 'scoped memory for tpu_custom_call.1']
    #allocation7 [shape = 'u8[524288]{0}', space=vmem, size = 0x80000, scoped, tag = 'input window, operand 3, single buffered']
    #allocation8 [shape = 'u8[131072]{0}', space=vmem, size = 0x20000, scoped, tag = 'input window, operand 5, single buffered']
    #allocation9 [shape = 's32[1]{0}', space=sflag, size = 0x4, scoped, tag = 'scoped memory for tpu_custom_call.1']
    #allocation10 [shape = 'u8[65536]{0}', space=vmem, size = 0x10000, scoped, tag = 'input window, operand 7, single buffered']
    #allocation11 [shape = 'u8[65536]{0}', space=vmem, size = 0x10000, scoped, tag = 'input window, operand 9, single buffered']
    #allocation12 [shape = 's32[1]{0}', space=sflag, size = 0x4, scoped, tag = 'scoped memory for tpu_custom_call.1']
    #allocation13 [shape = 'u8[4096]{0}', space=vmem, size = 0x1000, scoped, tag = 'output window, operand 0, single buffered']
    %16 = vsyncpa [#allocation3], 0
    %17 = vsyncpa [#allocation6], 0
    %18 = vsyncpa [#allocation9], 0
    %19 = vsyncpa [#allocation12], 0
    %20 = vsyncpa [#allocation4], 0
    // Predicated region
    $region2: #{tpu_custom_call.1} parent=1 // pred_check
      _
    $region3: #{tpu_custom_call.1} parent=1 // pred_check_branch
      %22 = sbr.rel (0) target = $region5
    $region4: #{tpu_custom_call.1} parent=1 // pred_region
      %s24 = ssub.s32 128, 128
      %25 = vsyncadd [#allocation3], %s24
      %s27 = sshll.u32 [#allocation2], 4
      %s28 = int_to_ptr.vmem [resolvable:$true] %s27
      %30 = dma.hbm_to_vmem [thread:$0]  %s0, 128, %s28, [#allocation3]
    $region5: #{tpu_custom_call.1} parent=1 // pred_fallthru
      _
    // Predicated region
    $region6: #{tpu_custom_call.1} parent=1 // pred_check
      _
    $region7: #{tpu_custom_call.1} parent=1 // pred_check_branch
      %32 = sbr.rel (0) target = $region9
    $region8: #{tpu_custom_call.1} parent=1 // pred_region
      %s34 = ssub.s32 2048, 2048
      %35 = vsyncadd [#allocation6], %s34
      %s36 = sshll.u32 [#allocation5], 4
      %s37 = int_to_ptr.vmem [resolvable:$true] %s36
      %42 = dma.hbm_to_vmem [thread:$0]  %s1, 2048, %s37, [#allocation6], 512, 512, 32
    $region9: #{tpu_custom_call.1} parent=1 // pred_fallthru
      _
    // Predicated region
    $region10: #{tpu_custom_call.1} parent=1 // pred_check
      _
    $region11: #{tpu_custom_call.1} parent=1 // pred_check_branch
      %44 = sbr.rel (0) target = $region13
    $region12: #{tpu_custom_call.1} parent=1 // pred_region
      _
    $region13: #{tpu_custom_call.1} parent=1 // pred_fallthru
      _
    // Predicated region
    $region14: #{tpu_custom_call.1} parent=1 // pred_check
      _
    $region15: #{tpu_custom_call.1} parent=1 // pred_check_branch
      %46 = sbr.rel (0) target = $region17
    $region16: #{tpu_custom_call.1} parent=1 // pred_region
      %s48 = ssub.s32 16384, 16384
      %49 = vsyncadd [#allocation6], %s48
      %s50 = sshll.u32 [#allocation7], 4
      %s51 = int_to_ptr.vmem [resolvable:$true] %s50
      %56 = dma.hbm_to_vmem [thread:$0]  %s3, 16384, %s51, [#allocation6], 256, 256, 16
    $region17: #{tpu_custom_call.1} parent=1 // pred_fallthru
      _
    // Predicated region
    $region18: #{tpu_custom_call.1} parent=1 // pred_check
      _
    $region19: #{tpu_custom_call.1} parent=1 // pred_check_branch
      %58 = sbr.rel (0) target = $region21
    $region20: #{tpu_custom_call.1} parent=1 // pred_region
      _
    $region21: #{tpu_custom_call.1} parent=1 // pred_fallthru
      _
    // Predicated region
    $region22: #{tpu_custom_call.1} parent=1 // pred_check
      _
    $region23: #{tpu_custom_call.1} parent=1 // pred_check_branch
      %60 = sbr.rel (0) target = $region25
    $region24: #{tpu_custom_call.1} parent=1 // pred_region
      %s62 = ssub.s32 4096, 4096
      %63 = vsyncadd [#allocation9], %s62
      %s64 = sshll.u32 [#allocation8], 4
      %s65 = int_to_ptr.vmem [resolvable:$true] %s64
      %70 = dma.hbm_to_vmem [thread:$0]  %s5, 4096, %s65, [#allocation9], 128, 128, 8
    $region25: #{tpu_custom_call.1} parent=1 // pred_fallthru
      _
    // Predicated region
    $region26: #{tpu_custom_call.1} parent=1 // pred_check
      _
    $region27: #{tpu_custom_call.1} parent=1 // pred_check_branch
      %72 = sbr.rel (0) target = $region29
    $region28: #{tpu_custom_call.1} parent=1 // pred_region
      _
    $region29: #{tpu_custom_call.1} parent=1 // pred_fallthru
      _
    // Predicated region
    $region30: #{tpu_custom_call.1} parent=1 // pred_check
      _
    $region31: #{tpu_custom_call.1} parent=1 // pred_check_branch
      %74 = sbr.rel (0) target = $region33
    $region32: #{tpu_custom_call.1} parent=1 // pred_region
      %s76 = ssub.s32 2048, 2048
      %77 = vsyncadd [#allocation9], %s76
      %s78 = sshll.u32 [#allocation10], 4
      %s79 = int_to_ptr.vmem [resolvable:$true] %s78
      %84 = dma.hbm_to_vmem [thread:$0]  %s7, 2048, %s79, [#allocation9], 128, 128, 8
    $region33: #{tpu_custom_call.1} parent=1 // pred_fallthru
      _
    // Predicated region
    $region34: #{tpu_custom_call.1} parent=1 // pred_check
      _
    $region35: #{tpu_custom_call.1} parent=1 // pred_check_branch
      %86 = sbr.rel (0) target = $region37
    $region36: #{tpu_custom_call.1} parent=1 // pred_region
      _
    $region37: #{tpu_custom_call.1} parent=1 // pred_fallthru
      _
    // Predicated region
    $region38: #{tpu_custom_call.1} parent=1 // pred_check
      _
    $region39: #{tpu_custom_call.1} parent=1 // pred_check_branch
      %88 = sbr.rel (0) target = $region41
    $region40: #{tpu_custom_call.1} parent=1 // pred_region
      %s90 = ssub.s32 2048, 2048
      %91 = vsyncadd [#allocation12], %s90
      %s92 = sshll.u32 [#allocation11], 4
      %s93 = int_to_ptr.vmem [resolvable:$true] %s92
      %98 = dma.hbm_to_vmem [thread:$0]  %s9, 2048, %s93, [#allocation12], 128, 128, 8
    $region41: #{tpu_custom_call.1} parent=1 // pred_fallthru
      _
    // Predicated region
    $region42: #{tpu_custom_call.1} parent=1 // pred_check
      _
    $region43: #{tpu_custom_call.1} parent=1 // pred_check_branch
      %100 = sbr.rel (0) target = $region45
    $region44: #{tpu_custom_call.1} parent=1 // pred_region
      _
    $region45: #{tpu_custom_call.1} parent=1 // pred_fallthru
      _
    // Predicated region
    $region46: #{tpu_custom_call.1} parent=1 // pred_check
      _
    $region47: #{tpu_custom_call.1} parent=1 // pred_check_branch
      %102 = sbr.rel (0) target = $region49
    $region48: #{tpu_custom_call.1} parent=1 // pred_region
      %103 = dma.done [#allocation3], 128
    $region49: #{tpu_custom_call.1} parent=1 // pred_fallthru
      _
    // Predicated region
    $region50: #{tpu_custom_call.1} parent=1 // pred_check
      _
    $region51: #{tpu_custom_call.1} parent=1 // pred_check_branch
      %105 = sbr.rel (0) target = $region53
    $region52: #{tpu_custom_call.1} parent=1 // pred_region
      %106 = dma.done [#allocation6], 2048
    $region53: #{tpu_custom_call.1} parent=1 // pred_fallthru
      _
    // Predicated region
    $region54: #{tpu_custom_call.1} parent=1 // pred_check
      _
    $region55: #{tpu_custom_call.1} parent=1 // pred_check_branch
      %108 = sbr.rel (0) target = $region57
    $region56: #{tpu_custom_call.1} parent=1 // pred_region
      %109 = dma.done [#allocation6], 16384
    $region57: #{tpu_custom_call.1} parent=1 // pred_fallthru
      _
    // Predicated region
    $region58: #{tpu_custom_call.1} parent=1 // pred_check
      _
    $region59: #{tpu_custom_call.1} parent=1 // pred_check_branch
      %111 = sbr.rel (0) target = $region61
    $region60: #{tpu_custom_call.1} parent=1 // pred_region
      %112 = dma.done [#allocation9], 4096
    $region61: #{tpu_custom_call.1} parent=1 // pred_fallthru
      _
    // Predicated region
    $region62: #{tpu_custom_call.1} parent=1 // pred_check
      _
    $region63: #{tpu_custom_call.1} parent=1 // pred_check_branch
      %114 = sbr.rel (0) target = $region65
    $region64: #{tpu_custom_call.1} parent=1 // pred_region
      %115 = dma.done [#allocation9], 2048
    $region65: #{tpu_custom_call.1} parent=1 // pred_fallthru
      _
    // Predicated region
    $region66: #{tpu_custom_call.1} parent=1 // pred_check
      _
    $region67: #{tpu_custom_call.1} parent=1 // pred_check_branch
      %117 = sbr.rel (0) target = $region69
    $region68: #{tpu_custom_call.1} parent=1 // pred_region
      %118 = dma.done [#allocation12], 2048
    $region69: #{tpu_custom_call.1} parent=1 // pred_fallthru
      _
    %v119 = vld [vmem:[#allocation2] sm:$0xff]
    %v120 = vld [vmem:[#allocation5] sm:$0xff]
    %v121 = vld [vmem:[#allocation5 + $0x8] sm:$0xff]
    %v122 = vld [vmem:[#allocation5 + $0x10] sm:$0xff]
    %v123 = vld [vmem:[#allocation5 + $0x18] sm:$0xff]
    %v124 = vld [vmem:[#allocation5 + $0x20] sm:$0xff]
    %v125 = vld [vmem:[#allocation5 + $0x28] sm:$0xff]
    %v126 = vld [vmem:[#allocation5 + $0x30] sm:$0xff]
    %v127 = vld [vmem:[#allocation5 + $0x38] sm:$0xff]
    %v128 = vld [vmem:[#allocation5 + $0x40] sm:$0xff]
    %v129 = vld [vmem:[#allocation5 + $0x48] sm:$0xff]
    %v130 = vld [vmem:[#allocation5 + $0x50] sm:$0xff]
    %v131 = vld [vmem:[#allocation5 + $0x58] sm:$0xff]
    %v132 = vld [vmem:[#allocation5 + $0x60] sm:$0xff]
    %v133 = vld [vmem:[#allocation5 + $0x68] sm:$0xff]
    %v134 = vld [vmem:[#allocation5 + $0x70] sm:$0xff]
    %v135 = vld [vmem:[#allocation5 + $0x78] sm:$0xff]
    %v136 = vld [vmem:[%s2] sm:$0xf]
    %v138 = vlaneseq
    %v139 = vshrl.u32 %v138, 7
    %v140 = vsub.s32 0, %v139
    %v141 = vrot.slane %v136, %v140
    %v142 = vlaneseq
    %v143 = vshrl.u32 %v142, 7
    %v144 = vsub.s32 1, %v143
    %v145 = vrot.slane %v136, %v144
    %v146 = vlaneseq
    %v147 = vshrl.u32 %v146, 7
    %v148 = vsub.s32 2, %v147
    %v149 = vrot.slane %v136, %v148
    %v150 = vlaneseq
    %v151 = vshrl.u32 %v150, 7
    %v152 = vsub.s32 3, %v151
    %v153 = vrot.slane %v136, %v152
    %vm158 = vcmask 261120
    %v160 = vsel %vm158, %v119, 0
    %162 = vmatprep.subr.mxu0 %v121
    %163 = vmatpush1.msra.mxu0 %v120
    %164 = vmatprep.subr.mxu0 %v125
    %165 = vmatpush1.msra.mxu0 %v124
    %166 = vmatprep.subr.mxu0 %v129
    %167 = vmatpush1.msra.mxu0 %v128
    %168 = vmatprep.subr.mxu0 %v133
    %169 = vmatpush1.msra.mxu0 %v132
    %170 = vmatprep.subr.mxu0 0.0
    %171 = vmatpush1.msra.mxu0 0.0
    %172 = vmatprep.subr.mxu0 0.0
    %173 = vmatpush1.msra.mxu0 0.0
    %174 = vmatprep.subr.mxu0 0.0
    %175 = vmatpush1.msra.mxu0 0.0
    %176 = vmatprep.subr.mxu0 0.0
    %177 = vmatpush1.msra.mxu0 0.0
    %178 = vmatprep.subr.mxu0 0.0
    %179 = vmatpush1.msra.mxu0 0.0
    %180 = vmatprep.subr.mxu0 0.0
    %181 = vmatpush1.msra.mxu0 0.0
    %182 = vmatprep.subr.mxu0 0.0
    %183 = vmatpush1.msra.mxu0 0.0
    %184 = vmatprep.subr.mxu0 0.0
    %185 = vmatpush1.msra.mxu0 0.0
    %186 = vmatprep.subr.mxu0 0.0
    %187 = vmatpush1.msra.mxu0 0.0
    %188 = vmatprep.subr.mxu0 0.0
    %189 = vmatpush1.msra.mxu0 0.0
    %190 = vmatprep.subr.mxu0 0.0
    %191 = vmatpush1.msra.mxu0 0.0
    %192 = vmatprep.subr.mxu0 0.0
    %193 = vmatpush1.msra.mxu0 0.0
    %194 = vmatprep.subr.mxu0 0.0
    %195 = vmatpush1.msra.mxu0 0.0
    %196 = vmatprep.subr.mxu0 0.0
    %197 = vmatpush1.msra.mxu0 0.0
    %198 = vmatprep.subr.mxu0 0.0
    %199 = vmatpush1.msra.mxu0 0.0
    %200 = vmatprep.subr.mxu0 0.0
    %201 = vmatpush1.msra.mxu0 0.0
    %202 = vmatprep.subr.mxu0 0.0
    %203 = vmatpush1.msra.mxu0 0.0
    %204 = vmatprep.subr.mxu0 0.0
    %205 = vmatpush1.msra.mxu0 0.0
    %206 = vmatprep.subr.mxu0 0.0
    %207 = vmatpush1.msra.mxu0 0.0
    %208 = vmatprep.subr.mxu0 0.0
    %209 = vmatpush1.msra.mxu0 0.0
    %210 = vmatprep.subr.mxu0 0.0
    %211 = vmatpush1.msra.mxu0 0.0
    %212 = vmatprep.subr.mxu0 0.0
    %213 = vmatpush1.msra.mxu0 0.0
    %214 = vmatprep.subr.mxu0 0.0
    %215 = vmatpush1.msra.mxu0 0.0
    %216 = vmatprep.subr.mxu0 0.0
    %217 = vmatpush1.msra.mxu0 0.0
    %218 = vmatprep.subr.mxu0 0.0
    %219 = vmatpush1.msra.mxu0 0.0
    %220 = vmatprep.subr.mxu0 0.0
    %221 = vmatpush1.msra.mxu0 0.0
    %222 = vmatprep.subr.mxu0 0.0
    %223 = vmatpush1.msra.mxu0 0.0
    %224 = vmatprep.subr.mxu0 0.0
    %225 = vmatpush1.msra.mxu0 0.0
    %226 = vmatprep.mubr.f32.mxu0 0.0
    %227 = vmatmul.mubr.f32.gmra.mrb[0].mxu0 %v160
    %v228 = vpop.f32.mrb[0].mxu0
    %v229 = vadd.f32 %v141, %v228
    %v230 = vpop.f32.mrb[0].mxu0
    %v231 = vadd.f32 %v145, %v230
    %232 = vdwg.mxu0
    %233 = vmatprep.subr.mxu0 %v123
    %234 = vmatpush1.msra.mxu0 %v122
    %235 = vmatprep.subr.mxu0 %v127
    %236 = vmatpush1.msra.mxu0 %v126
    %237 = vmatprep.subr.mxu0 %v131
    %238 = vmatpush1.msra.mxu0 %v130
    %239 = vmatprep.subr.mxu0 %v135
    %240 = vmatpush1.msra.mxu0 %v134
    %241 = vmatprep.subr.mxu0 0.0
    %242 = vmatpush1.msra.mxu0 0.0
    %243 = vmatprep.subr.mxu0 0.0
    %244 = vmatpush1.msra.mxu0 0.0
    %245 = vmatprep.subr.mxu0 0.0
    %246 = vmatpush1.msra.mxu0 0.0
    %247 = vmatprep.subr.mxu0 0.0
    %248 = vmatpush1.msra.mxu0 0.0
    %249 = vmatprep.subr.mxu0 0.0
    %250 = vmatpush1.msra.mxu0 0.0
    %251 = vmatprep.subr.mxu0 0.0
    %252 = vmatpush1.msra.mxu0 0.0
    %253 = vmatprep.subr.mxu0 0.0
    %254 = vmatpush1.msra.mxu0 0.0
    %255 = vmatprep.subr.mxu0 0.0
    %256 = vmatpush1.msra.mxu0 0.0
    %257 = vmatprep.subr.mxu0 0.0
    %258 = vmatpush1.msra.mxu0 0.0
    %259 = vmatprep.subr.mxu0 0.0
    %260 = vmatpush1.msra.mxu0 0.0
    %261 = vmatprep.subr.mxu0 0.0
    %262 = vmatpush1.msra.mxu0 0.0
    %263 = vmatprep.subr.mxu0 0.0
    %264 = vmatpush1.msra.mxu0 0.0
    %265 = vmatprep.subr.mxu0 0.0
    %266 = vmatpush1.msra.mxu0 0.0
    %267 = vmatprep.subr.mxu0 0.0
    %268 = vmatpush1.msra.mxu0 0.0
    %269 = vmatprep.subr.mxu0 0.0
    %270 = vmatpush1.msra.mxu0 0.0
    %271 = vmatprep.subr.mxu0 0.0
    %272 = vmatpush1.msra.mxu0 0.0
    %273 = vmatprep.subr.mxu0 0.0
    %274 = vmatpush1.msra.mxu0 0.0
    %275 = vmatprep.subr.mxu0 0.0
    %276 = vmatpush1.msra.mxu0 0.0
    %277 = vmatprep.subr.mxu0 0.0
    %278 = vmatpush1.msra.mxu0 0.0
    %279 = vmatprep.subr.mxu0 0.0
    %280 = vmatpush1.msra.mxu0 0.0
    %281 = vmatprep.subr.mxu0 0.0
    %282 = vmatpush1.msra.mxu0 0.0
    %283 = vmatprep.subr.mxu0 0.0
    %284 = vmatpush1.msra.mxu0 0.0
    %285 = vmatprep.subr.mxu0 0.0
    %286 = vmatpush1.msra.mxu0 0.0
    %287 = vmatprep.subr.mxu0 0.0
    %288 = vmatpush1.msra.mxu0 0.0
    %289 = vmatprep.subr.mxu0 0.0
    %290 = vmatpush1.msra.mxu0 0.0
    %291 = vmatprep.subr.mxu0 0.0
    %292 = vmatpush1.msra.mxu0 0.0
    %293 = vmatprep.subr.mxu0 0.0
    %294 = vmatpush1.msra.mxu0 0.0
    %295 = vmatprep.subr.mxu0 0.0
    %296 = vmatpush1.msra.mxu0 0.0
    %297 = vmatprep.mubr.f32.mxu0 0.0
    %298 = vmatmul.mubr.f32.gmra.mrb[0].mxu0 %v160
    %v299 = vpop.f32.mrb[0].mxu0
    %v300 = vadd.f32 %v149, %v299
    %v301 = vpop.f32.mrb[0].mxu0
    %v302 = vadd.f32 %v153, %v301
    %303 = vdwg.mxu0
    %v304 = vmax.f32 %v229, 0.0
    %v305 = vmax.f32 %v231, 0.0
    %v306 = vmax.f32 %v300, 0.0
    %v307 = vmax.f32 %v302, 0.0
    %v308 = vld [vmem:[#allocation7] sm:$0xff]
    %v309 = vld [vmem:[#allocation7 + $0x8] sm:$0xff]
    %v310 = vld [vmem:[#allocation7 + $0x10] sm:$0xff]
    %v311 = vld [vmem:[#allocation7 + $0x18] sm:$0xff]
    %v312 = vld [vmem:[#allocation7 + $0x20] sm:$0xff]
    %v313 = vld [vmem:[#allocation7 + $0x28] sm:$0xff]
    %v314 = vld [vmem:[#allocation7 + $0x30] sm:$0xff]
    %v315 = vld [vmem:[#allocation7 + $0x38] sm:$0xff]
    %v316 = vld [vmem:[#allocation7 + $0x40] sm:$0xff]
    %v317 = vld [vmem:[#allocation7 + $0x48] sm:$0xff]
    %v318 = vld [vmem:[#allocation7 + $0x50] sm:$0xff]
    %v319 = vld [vmem:[#allocation7 + $0x58] sm:$0xff]
    %v320 = vld [vmem:[#allocation7 + $0x60] sm:$0xff]
    %v321 = vld [vmem:[#allocation7 + $0x68] sm:$0xff]
    %v322 = vld [vmem:[#allocation7 + $0x70] sm:$0xff]
    %v323 = vld [vmem:[#allocation7 + $0x78] sm:$0xff]
    %v324 = vld [vmem:[#allocation7 + $0x80] sm:$0xff]
    %v325 = vld [vmem:[#allocation7 + $0x88] sm:$0xff]
    %v326 = vld [vmem:[#allocation7 + $0x90] sm:$0xff]
    %v327 = vld [vmem:[#allocation7 + $0x98] sm:$0xff]
    %v328 = vld [vmem:[#allocation7 + $0xa0] sm:$0xff]
    %v329 = vld [vmem:[#allocation7 + $0xa8] sm:$0xff]
    %v330 = vld [vmem:[#allocation7 + $0xb0] sm:$0xff]
    %v331 = vld [vmem:[#allocation7 + $0xb8] sm:$0xff]
    %v332 = vld [vmem:[#allocation7 + $0xc0] sm:$0xff]
    %v333 = vld [vmem:[#allocation7 + $0xc8] sm:$0xff]
    %v334 = vld [vmem:[#allocation7 + $0xd0] sm:$0xff]
    %v335 = vld [vmem:[#allocation7 + $0xd8] sm:$0xff]
    %v336 = vld [vmem:[#allocation7 + $0xe0] sm:$0xff]
    %v337 = vld [vmem:[#allocation7 + $0xe8] sm:$0xff]
    %v338 = vld [vmem:[#allocation7 + $0xf0] sm:$0xff]
    %v339 = vld [vmem:[#allocation7 + $0xf8] sm:$0xff]
    %v340 = vld [vmem:[#allocation7 + $0x100] sm:$0xff]
    %v341 = vld [vmem:[#allocation7 + $0x108] sm:$0xff]
    %v342 = vld [vmem:[#allocation7 + $0x110] sm:$0xff]
    %v343 = vld [vmem:[#allocation7 + $0x118] sm:$0xff]
    %v344 = vld [vmem:[#allocation7 + $0x120] sm:$0xff]
    %v345 = vld [vmem:[#allocation7 + $0x128] sm:$0xff]
    %v346 = vld [vmem:[#allocation7 + $0x130] sm:$0xff]
    %v347 = vld [vmem:[#allocation7 + $0x138] sm:$0xff]
    %v348 = vld [vmem:[#allocation7 + $0x140] sm:$0xff]
    %v349 = vld [vmem:[#allocation7 + $0x148] sm:$0xff]
    %v350 = vld [vmem:[#allocation7 + $0x150] sm:$0xff]
    %v351 = vld [vmem:[#allocation7 + $0x158] sm:$0xff]
    %v352 = vld [vmem:[#allocation7 + $0x160] sm:$0xff]
    %v353 = vld [vmem:[#allocation7 + $0x168] sm:$0xff]
    %v354 = vld [vmem:[#allocation7 + $0x170] sm:$0xff]
    %v355 = vld [vmem:[#allocation7 + $0x178] sm:$0xff]
    %v356 = vld [vmem:[#allocation7 + $0x180] sm:$0xff]
    %v357 = vld [vmem:[#allocation7 + $0x188] sm:$0xff]
    %v358 = vld [vmem:[#allocation7 + $0x190] sm:$0xff]
    %v359 = vld [vmem:[#allocation7 + $0x198] sm:$0xff]
    %v360 = vld [vmem:[#allocation7 + $0x1a0] sm:$0xff]
    %v361 = vld [vmem:[#allocation7 + $0x1a8] sm:$0xff]
    %v362 = vld [vmem:[#allocation7 + $0x1b0] sm:$0xff]
    %v363 = vld [vmem:[#allocation7 + $0x1b8] sm:$0xff]
    %v364 = vld [vmem:[#allocation7 + $0x1c0] sm:$0xff]
    %v365 = vld [vmem:[#allocation7 + $0x1c8] sm:$0xff]
    %v366 = vld [vmem:[#allocation7 + $0x1d0] sm:$0xff]
    %v367 = vld [vmem:[#allocation7 + $0x1d8] sm:$0xff]
    %v368 = vld [vmem:[#allocation7 + $0x1e0] sm:$0xff]
    %v369 = vld [vmem:[#allocation7 + $0x1e8] sm:$0xff]
    %v370 = vld [vmem:[#allocation7 + $0x1f0] sm:$0xff]
    %v371 = vld [vmem:[#allocation7 + $0x1f8] sm:$0xff]
    %v372 = vld [vmem:[#allocation7 + $0x200] sm:$0xff]
    %v373 = vld [vmem:[#allocation7 + $0x208] sm:$0xff]
    %v374 = vld [vmem:[#allocation7 + $0x210] sm:$0xff]
    %v375 = vld [vmem:[#allocation7 + $0x218] sm:$0xff]
    %v376 = vld [vmem:[#allocation7 + $0x220] sm:$0xff]
    %v377 = vld [vmem:[#allocation7 + $0x228] sm:$0xff]
    %v378 = vld [vmem:[#allocation7 + $0x230] sm:$0xff]
    %v379 = vld [vmem:[#allocation7 + $0x238] sm:$0xff]
    %v380 = vld [vmem:[#allocation7 + $0x240] sm:$0xff]
    %v381 = vld [vmem:[#allocation7 + $0x248] sm:$0xff]
    %v382 = vld [vmem:[#allocation7 + $0x250] sm:$0xff]
    %v383 = vld [vmem:[#allocation7 + $0x258] sm:$0xff]
    %v384 = vld [vmem:[#allocation7 + $0x260] sm:$0xff]
    %v385 = vld [vmem:[#allocation7 + $0x268] sm:$0xff]
    %v386 = vld [vmem:[#allocation7 + $0x270] sm:$0xff]
    %v387 = vld [vmem:[#allocation7 + $0x278] sm:$0xff]
    %v388 = vld [vmem:[#allocation7 + $0x280] sm:$0xff]
    %v389 = vld [vmem:[#allocation7 + $0x288] sm:$0xff]
    %v390 = vld [vmem:[#allocation7 + $0x290] sm:$0xff]
    %v391 = vld [vmem:[#allocation7 + $0x298] sm:$0xff]
    %v392 = vld [vmem:[#allocation7 + $0x2a0] sm:$0xff]
    %v393 = vld [vmem:[#allocation7 + $0x2a8] sm:$0xff]
    %v394 = vld [vmem:[#allocation7 + $0x2b0] sm:$0xff]
    %v395 = vld [vmem:[#allocation7 + $0x2b8] sm:$0xff]
    %v396 = vld [vmem:[#allocation7 + $0x2c0] sm:$0xff]
    %v397 = vld [vmem:[#allocation7 + $0x2c8] sm:$0xff]
    %v398 = vld [vmem:[#allocation7 + $0x2d0] sm:$0xff]
    %v399 = vld [vmem:[#allocation7 + $0x2d8] sm:$0xff]
    %v400 = vld [vmem:[#allocation7 + $0x2e0] sm:$0xff]
    %v401 = vld [vmem:[#allocation7 + $0x2e8] sm:$0xff]
    %v402 = vld [vmem:[#allocation7 + $0x2f0] sm:$0xff]
    %v403 = vld [vmem:[#allocation7 + $0x2f8] sm:$0xff]
    %v404 = vld [vmem:[#allocation7 + $0x300] sm:$0xff]
    %v405 = vld [vmem:[#allocation7 + $0x308] sm:$0xff]
    %v406 = vld [vmem:[#allocation7 + $0x310] sm:$0xff]
    %v407 = vld [vmem:[#allocation7 + $0x318] sm:$0xff]
    %v408 = vld [vmem:[#allocation7 + $0x320] sm:$0xff]
    %v409 = vld [vmem:[#allocation7 + $0x328] sm:$0xff]
    %v410 = vld [vmem:[#allocation7 + $0x330] sm:$0xff]
    %v411 = vld [vmem:[#allocation7 + $0x338] sm:$0xff]
    %v412 = vld [vmem:[#allocation7 + $0x340] sm:$0xff]
    %v413 = vld [vmem:[#allocation7 + $0x348] sm:$0xff]
    %v414 = vld [vmem:[#allocation7 + $0x350] sm:$0xff]
    %v415 = vld [vmem:[#allocation7 + $0x358] sm:$0xff]
    %v416 = vld [vmem:[#allocation7 + $0x360] sm:$0xff]
    %v417 = vld [vmem:[#allocation7 + $0x368] sm:$0xff]
    %v418 = vld [vmem:[#allocation7 + $0x370] sm:$0xff]
    %v419 = vld [vmem:[#allocation7 + $0x378] sm:$0xff]
    %v420 = vld [vmem:[#allocation7 + $0x380] sm:$0xff]
    %v421 = vld [vmem:[#allocation7 + $0x388] sm:$0xff]
    %v422 = vld [vmem:[#allocation7 + $0x390] sm:$0xff]
    %v423 = vld [vmem:[#allocation7 + $0x398] sm:$0xff]
    %v424 = vld [vmem:[#allocation7 + $0x3a0] sm:$0xff]
    %v425 = vld [vmem:[#allocation7 + $0x3a8] sm:$0xff]
    %v426 = vld [vmem:[#allocation7 + $0x3b0] sm:$0xff]
    %v427 = vld [vmem:[#allocation7 + $0x3b8] sm:$0xff]
    %v428 = vld [vmem:[#allocation7 + $0x3c0] sm:$0xff]
    %v429 = vld [vmem:[#allocation7 + $0x3c8] sm:$0xff]
    %v430 = vld [vmem:[#allocation7 + $0x3d0] sm:$0xff]
    %v431 = vld [vmem:[#allocation7 + $0x3d8] sm:$0xff]
    %v432 = vld [vmem:[#allocation7 + $0x3e0] sm:$0xff]
    %v433 = vld [vmem:[#allocation7 + $0x3e8] sm:$0xff]
    %v434 = vld [vmem:[#allocation7 + $0x3f0] sm:$0xff]
    %v435 = vld [vmem:[#allocation7 + $0x3f8] sm:$0xff]
    %v436 = vld [vmem:[%s4] sm:$0x3]
    %v438 = vlaneseq
    %v439 = vshrl.u32 %v438, 7
    %v440 = vsub.s32 0, %v439
    %v441 = vrot.slane %v436, %v440
    %v442 = vlaneseq
    %v443 = vshrl.u32 %v442, 7
    %v444 = vsub.s32 1, %v443
    %v445 = vrot.slane %v436, %v444
    %448 = vmatprep.subr.mxu0 %v309
    %449 = vmatpush1.msra.mxu0 %v308
    %450 = vmatprep.subr.mxu0 %v311
    %451 = vmatpush1.msra.mxu0 %v310
    %452 = vmatprep.subr.mxu0 %v313
    %453 = vmatpush1.msra.mxu0 %v312
    %454 = vmatprep.subr.mxu0 %v315
    %455 = vmatpush1.msra.mxu0 %v314
    %456 = vmatprep.subr.mxu0 %v317
    %457 = vmatpush1.msra.mxu0 %v316
    %458 = vmatprep.subr.mxu0 %v319
    %459 = vmatpush1.msra.mxu0 %v318
    %460 = vmatprep.subr.mxu0 %v321
    %461 = vmatpush1.msra.mxu0 %v320
    %462 = vmatprep.subr.mxu0 %v323
    %463 = vmatpush1.msra.mxu0 %v322
    %464 = vmatprep.subr.mxu0 %v325
    %465 = vmatpush1.msra.mxu0 %v324
    %466 = vmatprep.subr.mxu0 %v327
    %467 = vmatpush1.msra.mxu0 %v326
    %468 = vmatprep.subr.mxu0 %v329
    %469 = vmatpush1.msra.mxu0 %v328
    %470 = vmatprep.subr.mxu0 %v331
    %471 = vmatpush1.msra.mxu0 %v330
    %472 = vmatprep.subr.mxu0 %v333
    %473 = vmatpush1.msra.mxu0 %v332
    %474 = vmatprep.subr.mxu0 %v335
    %475 = vmatpush1.msra.mxu0 %v334
    %476 = vmatprep.subr.mxu0 %v337
    %477 = vmatpush1.msra.mxu0 %v336
    %478 = vmatprep.subr.mxu0 %v339
    %479 = vmatpush1.msra.mxu0 %v338
    %480 = vmatprep.subr.mxu0 %v341
    %481 = vmatpush1.msra.mxu0 %v340
    %482 = vmatprep.subr.mxu0 %v343
    %483 = vmatpush1.msra.mxu0 %v342
    %484 = vmatprep.subr.mxu0 %v345
    %485 = vmatpush1.msra.mxu0 %v344
    %486 = vmatprep.subr.mxu0 %v347
    %487 = vmatpush1.msra.mxu0 %v346
    %488 = vmatprep.subr.mxu0 %v349
    %489 = vmatpush1.msra.mxu0 %v348
    %490 = vmatprep.subr.mxu0 %v351
    %491 = vmatpush1.msra.mxu0 %v350
    %492 = vmatprep.subr.mxu0 %v353
    %493 = vmatpush1.msra.mxu0 %v352
    %494 = vmatprep.subr.mxu0 %v355
    %495 = vmatpush1.msra.mxu0 %v354
    %496 = vmatprep.subr.mxu0 %v357
    %497 = vmatpush1.msra.mxu0 %v356
    %498 = vmatprep.subr.mxu0 %v359
    %499 = vmatpush1.msra.mxu0 %v358
    %500 = vmatprep.subr.mxu0 %v361
    %501 = vmatpush1.msra.mxu0 %v360
    %502 = vmatprep.subr.mxu0 %v363
    %503 = vmatpush1.msra.mxu0 %v362
    %504 = vmatprep.subr.mxu0 %v365
    %505 = vmatpush1.msra.mxu0 %v364
    %506 = vmatprep.subr.mxu0 %v367
    %507 = vmatpush1.msra.mxu0 %v366
    %508 = vmatprep.subr.mxu0 %v369
    %509 = vmatpush1.msra.mxu0 %v368
    %510 = vmatprep.subr.mxu0 %v371
    %511 = vmatpush1.msra.mxu0 %v370
    %512 = vmatprep.mubr.f32.mxu0 %v305
    %513 = vmatmul.mubr.f32.gmra.mrb[0].mxu0 %v304
    %v514 = vpop.f32.mrb[0].mxu0
    %v515 = vadd.f32 %v441, %v514
    %v516 = vpop.f32.mrb[0].mxu0
    %v517 = vadd.f32 %v445, %v516
    %518 = vdwg.mxu0
    %519 = vmatprep.subr.mxu0 %v373
    %520 = vmatpush1.msra.mxu0 %v372
    %521 = vmatprep.subr.mxu0 %v375
    %522 = vmatpush1.msra.mxu0 %v374
    %523 = vmatprep.subr.mxu0 %v377
    %524 = vmatpush1.msra.mxu0 %v376
    %525 = vmatprep.subr.mxu0 %v379
    %526 = vmatpush1.msra.mxu0 %v378
    %527 = vmatprep.subr.mxu0 %v381
    %528 = vmatpush1.msra.mxu0 %v380
    %529 = vmatprep.subr.mxu0 %v383
    %530 = vmatpush1.msra.mxu0 %v382
    %531 = vmatprep.subr.mxu0 %v385
    %532 = vmatpush1.msra.mxu0 %v384
    %533 = vmatprep.subr.mxu0 %v387
    %534 = vmatpush1.msra.mxu0 %v386
    %535 = vmatprep.subr.mxu0 %v389
    %536 = vmatpush1.msra.mxu0 %v388
    %537 = vmatprep.subr.mxu0 %v391
    %538 = vmatpush1.msra.mxu0 %v390
    %539 = vmatprep.subr.mxu0 %v393
    %540 = vmatpush1.msra.mxu0 %v392
    %541 = vmatprep.subr.mxu0 %v395
    %542 = vmatpush1.msra.mxu0 %v394
    %543 = vmatprep.subr.mxu0 %v397
    %544 = vmatpush1.msra.mxu0 %v396
    %545 = vmatprep.subr.mxu0 %v399
    %546 = vmatpush1.msra.mxu0 %v398
    %547 = vmatprep.subr.mxu0 %v401
    %548 = vmatpush1.msra.mxu0 %v400
    %549 = vmatprep.subr.mxu0 %v403
    %550 = vmatpush1.msra.mxu0 %v402
    %551 = vmatprep.subr.mxu0 %v405
    %552 = vmatpush1.msra.mxu0 %v404
    %553 = vmatprep.subr.mxu0 %v407
    %554 = vmatpush1.msra.mxu0 %v406
    %555 = vmatprep.subr.mxu0 %v409
    %556 = vmatpush1.msra.mxu0 %v408
    %557 = vmatprep.subr.mxu0 %v411
    %558 = vmatpush1.msra.mxu0 %v410
    %559 = vmatprep.subr.mxu0 %v413
    %560 = vmatpush1.msra.mxu0 %v412
    %561 = vmatprep.subr.mxu0 %v415
    %562 = vmatpush1.msra.mxu0 %v414
    %563 = vmatprep.subr.mxu0 %v417
    %564 = vmatpush1.msra.mxu0 %v416
    %565 = vmatprep.subr.mxu0 %v419
    %566 = vmatpush1.msra.mxu0 %v418
    %567 = vmatprep.subr.mxu0 %v421
    %568 = vmatpush1.msra.mxu0 %v420
    %569 = vmatprep.subr.mxu0 %v423
    %570 = vmatpush1.msra.mxu0 %v422
    %571 = vmatprep.subr.mxu0 %v425
    %572 = vmatpush1.msra.mxu0 %v424
    %573 = vmatprep.subr.mxu0 %v427
    %574 = vmatpush1.msra.mxu0 %v426
    %575 = vmatprep.subr.mxu0 %v429
    %576 = vmatpush1.msra.mxu0 %v428
    %577 = vmatprep.subr.mxu0 %v431
    %578 = vmatpush1.msra.mxu0 %v430
    %579 = vmatprep.subr.mxu0 %v433
    %580 = vmatpush1.msra.mxu0 %v432
    %581 = vmatprep.subr.mxu0 %v435
    %582 = vmatpush1.msra.mxu0 %v434
    %583 = vmatprep.mubr.f32.mxu0 %v307
    %584 = vmatmul.mubr.f32.gmra.mrb[0].mxu0 %v306
    %v585 = vpop.f32.mrb[0].mxu0
    %v586 = vadd.f32 %v515, %v585
    %v587 = vpop.f32.mrb[0].mxu0
    %v588 = vadd.f32 %v517, %v587
    %589 = vdwg.mxu0
    %v590 = vmax.f32 %v586, 0.0
    %v591 = vmax.f32 %v588, 0.0
    %v592 = vld [vmem:[#allocation8] sm:$0xff]
    %v593 = vld [vmem:[#allocation8 + $0x8] sm:$0xff]
    %v594 = vld [vmem:[#allocation8 + $0x10] sm:$0xff]
    %v595 = vld [vmem:[#allocation8 + $0x18] sm:$0xff]
    %v596 = vld [vmem:[#allocation8 + $0x20] sm:$0xff]
    %v597 = vld [vmem:[#allocation8 + $0x28] sm:$0xff]
    %v598 = vld [vmem:[#allocation8 + $0x30] sm:$0xff]
    %v599 = vld [vmem:[#allocation8 + $0x38] sm:$0xff]
    %v600 = vld [vmem:[#allocation8 + $0x40] sm:$0xff]
    %v601 = vld [vmem:[#allocation8 + $0x48] sm:$0xff]
    %v602 = vld [vmem:[#allocation8 + $0x50] sm:$0xff]
    %v603 = vld [vmem:[#allocation8 + $0x58] sm:$0xff]
    %v604 = vld [vmem:[#allocation8 + $0x60] sm:$0xff]
    %v605 = vld [vmem:[#allocation8 + $0x68] sm:$0xff]
    %v606 = vld [vmem:[#allocation8 + $0x70] sm:$0xff]
    %v607 = vld [vmem:[#allocation8 + $0x78] sm:$0xff]
    %v608 = vld [vmem:[#allocation8 + $0x80] sm:$0xff]
    %v609 = vld [vmem:[#allocation8 + $0x88] sm:$0xff]
    %v610 = vld [vmem:[#allocation8 + $0x90] sm:$0xff]
    %v611 = vld [vmem:[#allocation8 + $0x98] sm:$0xff]
    %v612 = vld [vmem:[#allocation8 + $0xa0] sm:$0xff]
    %v613 = vld [vmem:[#allocation8 + $0xa8] sm:$0xff]
    %v614 = vld [vmem:[#allocation8 + $0xb0] sm:$0xff]
    %v615 = vld [vmem:[#allocation8 + $0xb8] sm:$0xff]
    %v616 = vld [vmem:[#allocation8 + $0xc0] sm:$0xff]
    %v617 = vld [vmem:[#allocation8 + $0xc8] sm:$0xff]
    %v618 = vld [vmem:[#allocation8 + $0xd0] sm:$0xff]
    %v619 = vld [vmem:[#allocation8 + $0xd8] sm:$0xff]
    %v620 = vld [vmem:[#allocation8 + $0xe0] sm:$0xff]
    %v621 = vld [vmem:[#allocation8 + $0xe8] sm:$0xff]
    %v622 = vld [vmem:[#allocation8 + $0xf0] sm:$0xff]
    %v623 = vld [vmem:[#allocation8 + $0xf8] sm:$0xff]
    %v624 = vld [vmem:[%s6] sm:$0x1]
    %v626 = vlaneseq
    %v627 = vshrl.u32 %v626, 7
    %v628 = vsub.s32 0, %v627
    %v629 = vrot.slane %v624, %v628
    %631 = vmatprep.subr.mxu0 0.0
    %632 = vmatpush1.msra.mxu0 %v592
    %633 = vmatprep.subr.mxu0 0.0
    %634 = vmatpush1.msra.mxu0 %v593
    %635 = vmatprep.subr.mxu0 0.0
    %636 = vmatpush1.msra.mxu0 %v594
    %637 = vmatprep.subr.mxu0 0.0
    %638 = vmatpush1.msra.mxu0 %v595
    %639 = vmatprep.subr.mxu0 0.0
    %640 = vmatpush1.msra.mxu0 %v596
    %641 = vmatprep.subr.mxu0 0.0
    %642 = vmatpush1.msra.mxu0 %v597
    %643 = vmatprep.subr.mxu0 0.0
    %644 = vmatpush1.msra.mxu0 %v598
    %645 = vmatprep.subr.mxu0 0.0
    %646 = vmatpush1.msra.mxu0 %v599
    %647 = vmatprep.subr.mxu0 0.0
    %648 = vmatpush1.msra.mxu0 %v600
    %649 = vmatprep.subr.mxu0 0.0
    %650 = vmatpush1.msra.mxu0 %v601
    %651 = vmatprep.subr.mxu0 0.0
    %652 = vmatpush1.msra.mxu0 %v602
    %653 = vmatprep.subr.mxu0 0.0
    %654 = vmatpush1.msra.mxu0 %v603
    %655 = vmatprep.subr.mxu0 0.0
    %656 = vmatpush1.msra.mxu0 %v604
    %657 = vmatprep.subr.mxu0 0.0
    %658 = vmatpush1.msra.mxu0 %v605
    %659 = vmatprep.subr.mxu0 0.0
    %660 = vmatpush1.msra.mxu0 %v606
    %661 = vmatprep.subr.mxu0 0.0
    %662 = vmatpush1.msra.mxu0 %v607
    %663 = vmatprep.subr.mxu0 0.0
    %664 = vmatpush1.msra.mxu0 %v608
    %665 = vmatprep.subr.mxu0 0.0
    %666 = vmatpush1.msra.mxu0 %v609
    %667 = vmatprep.subr.mxu0 0.0
    %668 = vmatpush1.msra.mxu0 %v610
    %669 = vmatprep.subr.mxu0 0.0
    %670 = vmatpush1.msra.mxu0 %v611
    %671 = vmatprep.subr.mxu0 0.0
    %672 = vmatpush1.msra.mxu0 %v612
    %673 = vmatprep.subr.mxu0 0.0
    %674 = vmatpush1.msra.mxu0 %v613
    %675 = vmatprep.subr.mxu0 0.0
    %676 = vmatpush1.msra.mxu0 %v614
    %677 = vmatprep.subr.mxu0 0.0
    %678 = vmatpush1.msra.mxu0 %v615
    %679 = vmatprep.subr.mxu0 0.0
    %680 = vmatpush1.msra.mxu0 %v616
    %681 = vmatprep.subr.mxu0 0.0
    %682 = vmatpush1.msra.mxu0 %v617
    %683 = vmatprep.subr.mxu0 0.0
    %684 = vmatpush1.msra.mxu0 %v618
    %685 = vmatprep.subr.mxu0 0.0
    %686 = vmatpush1.msra.mxu0 %v619
    %687 = vmatprep.subr.mxu0 0.0
    %688 = vmatpush1.msra.mxu0 %v620
    %689 = vmatprep.subr.mxu0 0.0
    %690 = vmatpush1.msra.mxu0 %v621
    %691 = vmatprep.subr.mxu0 0.0
    %692 = vmatpush1.msra.mxu0 %v622
    %693 = vmatprep.subr.mxu0 0.0
    %694 = vmatpush1.msra.mxu0 %v623
    %695 = vmatprep.mubr.f32.mxu0 %v591
    %696 = vmatmul.mubr.f32.gmra.mrb[0].mxu0 %v590
    %v697 = vpop.f32.mrb[0].mxu0
    %v698 = vadd.f32 %v629, %v697
    %v699 = vpop.f32.mrb[0].mxu0
    %700 = vdwg.mxu0
    %v701 = vmax.f32 %v698, 0.0
    %v702 = vld [vmem:[#allocation10] sm:$0xff]
    %v703 = vld [vmem:[#allocation10 + $0x8] sm:$0xff]
    %v704 = vld [vmem:[#allocation10 + $0x10] sm:$0xff]
    %v705 = vld [vmem:[#allocation10 + $0x18] sm:$0xff]
    %v706 = vld [vmem:[#allocation10 + $0x20] sm:$0xff]
    %v707 = vld [vmem:[#allocation10 + $0x28] sm:$0xff]
    %v708 = vld [vmem:[#allocation10 + $0x30] sm:$0xff]
    %v709 = vld [vmem:[#allocation10 + $0x38] sm:$0xff]
    %v710 = vld [vmem:[#allocation10 + $0x40] sm:$0xff]
    %v711 = vld [vmem:[#allocation10 + $0x48] sm:$0xff]
    %v712 = vld [vmem:[#allocation10 + $0x50] sm:$0xff]
    %v713 = vld [vmem:[#allocation10 + $0x58] sm:$0xff]
    %v714 = vld [vmem:[#allocation10 + $0x60] sm:$0xff]
    %v715 = vld [vmem:[#allocation10 + $0x68] sm:$0xff]
    %v716 = vld [vmem:[#allocation10 + $0x70] sm:$0xff]
    %v717 = vld [vmem:[#allocation10 + $0x78] sm:$0xff]
    %v718 = vld [vmem:[%s8] sm:$0x1]
    %v720 = vlaneseq
    %v721 = vshrl.u32 %v720, 7
    %v722 = vsub.s32 0, %v721
    %v723 = vrot.slane %v718, %v722
    %725 = vmatprep.subr.mxu0 0.0
    %726 = vmatpush1.msra.mxu0 %v702
    %727 = vmatprep.subr.mxu0 0.0
    %728 = vmatpush1.msra.mxu0 %v703
    %729 = vmatprep.subr.mxu0 0.0
    %730 = vmatpush1.msra.mxu0 %v704
    %731 = vmatprep.subr.mxu0 0.0
    %732 = vmatpush1.msra.mxu0 %v705
    %733 = vmatprep.subr.mxu0 0.0
    %734 = vmatpush1.msra.mxu0 %v706
    %735 = vmatprep.subr.mxu0 0.0
    %736 = vmatpush1.msra.mxu0 %v707
    %737 = vmatprep.subr.mxu0 0.0
    %738 = vmatpush1.msra.mxu0 %v708
    %739 = vmatprep.subr.mxu0 0.0
    %740 = vmatpush1.msra.mxu0 %v709
    %741 = vmatprep.subr.mxu0 0.0
    %742 = vmatpush1.msra.mxu0 %v710
    %743 = vmatprep.subr.mxu0 0.0
    %744 = vmatpush1.msra.mxu0 %v711
    %745 = vmatprep.subr.mxu0 0.0
    %746 = vmatpush1.msra.mxu0 %v712
    %747 = vmatprep.subr.mxu0 0.0
    %748 = vmatpush1.msra.mxu0 %v713
    %749 = vmatprep.subr.mxu0 0.0
    %750 = vmatpush1.msra.mxu0 %v714
    %751 = vmatprep.subr.mxu0 0.0
    %752 = vmatpush1.msra.mxu0 %v715
    %753 = vmatprep.subr.mxu0 0.0
    %754 = vmatpush1.msra.mxu0 %v716
    %755 = vmatprep.subr.mxu0 0.0
    %756 = vmatpush1.msra.mxu0 %v717
    %757 = vmatprep.subr.mxu0 0.0
    %758 = vmatpush1.msra.mxu0 0.0
    %759 = vmatprep.subr.mxu0 0.0
    %760 = vmatpush1.msra.mxu0 0.0
    %761 = vmatprep.subr.mxu0 0.0
    %762 = vmatpush1.msra.mxu0 0.0
    %763 = vmatprep.subr.mxu0 0.0
    %764 = vmatpush1.msra.mxu0 0.0
    %765 = vmatprep.subr.mxu0 0.0
    %766 = vmatpush1.msra.mxu0 0.0
    %767 = vmatprep.subr.mxu0 0.0
    %768 = vmatpush1.msra.mxu0 0.0
    %769 = vmatprep.subr.mxu0 0.0
    %770 = vmatpush1.msra.mxu0 0.0
    %771 = vmatprep.subr.mxu0 0.0
    %772 = vmatpush1.msra.mxu0 0.0
    %773 = vmatprep.subr.mxu0 0.0
    %774 = vmatpush1.msra.mxu0 0.0
    %775 = vmatprep.subr.mxu0 0.0
    %776 = vmatpush1.msra.mxu0 0.0
    %777 = vmatprep.subr.mxu0 0.0
    %778 = vmatpush1.msra.mxu0 0.0
    %779 = vmatprep.subr.mxu0 0.0
    %780 = vmatpush1.msra.mxu0 0.0
    %781 = vmatprep.subr.mxu0 0.0
    %782 = vmatpush1.msra.mxu0 0.0
    %783 = vmatprep.subr.mxu0 0.0
    %784 = vmatpush1.msra.mxu0 0.0
    %785 = vmatprep.subr.mxu0 0.0
    %786 = vmatpush1.msra.mxu0 0.0
    %787 = vmatprep.subr.mxu0 0.0
    %788 = vmatpush1.msra.mxu0 0.0
    %789 = vmatprep.mubr.f32.mxu0 0.0
    %790 = vmatmul.mubr.f32.gmra.mrb[0].mxu0 %v701
    %v791 = vpop.f32.mrb[0].mxu0
    %v792 = vadd.f32 %v723, %v791
    %v793 = vpop.f32.mrb[0].mxu0
    %794 = vdwg.mxu0
    %v795 = vmax.f32 %v792, 0.0
    %v796 = vld [vmem:[#allocation11] sm:$0xff]
    %v797 = vld [vmem:[#allocation11 + $0x8] sm:$0xff]
    %v798 = vld [vmem:[#allocation11 + $0x10] sm:$0xff]
    %v799 = vld [vmem:[#allocation11 + $0x18] sm:$0xff]
    %v800 = vld [vmem:[#allocation11 + $0x20] sm:$0xff]
    %v801 = vld [vmem:[#allocation11 + $0x28] sm:$0xff]
    %v802 = vld [vmem:[#allocation11 + $0x30] sm:$0xff]
    %v803 = vld [vmem:[#allocation11 + $0x38] sm:$0xff]
    %v804 = vld [vmem:[#allocation11 + $0x40] sm:$0xff]
    %v805 = vld [vmem:[#allocation11 + $0x48] sm:$0xff]
    %v806 = vld [vmem:[#allocation11 + $0x50] sm:$0xff]
    %v807 = vld [vmem:[#allocation11 + $0x58] sm:$0xff]
    %v808 = vld [vmem:[#allocation11 + $0x60] sm:$0xff]
    %v809 = vld [vmem:[#allocation11 + $0x68] sm:$0xff]
    %v810 = vld [vmem:[#allocation11 + $0x70] sm:$0xff]
    %v811 = vld [vmem:[#allocation11 + $0x78] sm:$0xff]
    %v812 = vld [vmem:[%s10] sm:$0x1]
    %v814 = vlaneseq
    %v815 = vshrl.u32 %v814, 7
    %v816 = vsub.s32 0, %v815
    %v817 = vrot.slane %v812, %v816
    %819 = vmatprep.subr.mxu0 0.0
    %820 = vmatpush1.msra.mxu0 %v796
    %821 = vmatprep.subr.mxu0 0.0
    %822 = vmatpush1.msra.mxu0 %v797
    %823 = vmatprep.subr.mxu0 0.0
    %824 = vmatpush1.msra.mxu0 %v798
    %825 = vmatprep.subr.mxu0 0.0
    %826 = vmatpush1.msra.mxu0 %v799
    %827 = vmatprep.subr.mxu0 0.0
    %828 = vmatpush1.msra.mxu0 %v800
    %829 = vmatprep.subr.mxu0 0.0
    %830 = vmatpush1.msra.mxu0 %v801
    %831 = vmatprep.subr.mxu0 0.0
    %832 = vmatpush1.msra.mxu0 %v802
    %833 = vmatprep.subr.mxu0 0.0
    %834 = vmatpush1.msra.mxu0 %v803
    %835 = vmatprep.subr.mxu0 0.0
    %836 = vmatpush1.msra.mxu0 %v804
    %837 = vmatprep.subr.mxu0 0.0
    %838 = vmatpush1.msra.mxu0 %v805
    %839 = vmatprep.subr.mxu0 0.0
    %840 = vmatpush1.msra.mxu0 %v806
    %841 = vmatprep.subr.mxu0 0.0
    %842 = vmatpush1.msra.mxu0 %v807
    %843 = vmatprep.subr.mxu0 0.0
    %844 = vmatpush1.msra.mxu0 %v808
    %845 = vmatprep.subr.mxu0 0.0
    %846 = vmatpush1.msra.mxu0 %v809
    %847 = vmatprep.subr.mxu0 0.0
    %848 = vmatpush1.msra.mxu0 %v810
    %849 = vmatprep.subr.mxu0 0.0
    %850 = vmatpush1.msra.mxu0 %v811
    %851 = vmatprep.subr.mxu0 0.0
    %852 = vmatpush1.msra.mxu0 0.0
    %853 = vmatprep.subr.mxu0 0.0
    %854 = vmatpush1.msra.mxu0 0.0
    %855 = vmatprep.subr.mxu0 0.0
    %856 = vmatpush1.msra.mxu0 0.0
    %857 = vmatprep.subr.mxu0 0.0
    %858 = vmatpush1.msra.mxu0 0.0
    %859 = vmatprep.subr.mxu0 0.0
    %860 = vmatpush1.msra.mxu0 0.0
    %861 = vmatprep.subr.mxu0 0.0
    %862 = vmatpush1.msra.mxu0 0.0
    %863 = vmatprep.subr.mxu0 0.0
    %864 = vmatpush1.msra.mxu0 0.0
    %865 = vmatprep.subr.mxu0 0.0
    %866 = vmatpush1.msra.mxu0 0.0
    %867 = vmatprep.subr.mxu0 0.0
    %868 = vmatpush1.msra.mxu0 0.0
    %869 = vmatprep.subr.mxu0 0.0
    %870 = vmatpush1.msra.mxu0 0.0
    %871 = vmatprep.subr.mxu0 0.0
    %872 = vmatpush1.msra.mxu0 0.0
    %873 = vmatprep.subr.mxu0 0.0
    %874 = vmatpush1.msra.mxu0 0.0
    %875 = vmatprep.subr.mxu0 0.0
    %876 = vmatpush1.msra.mxu0 0.0
    %877 = vmatprep.subr.mxu0 0.0
    %878 = vmatpush1.msra.mxu0 0.0
    %879 = vmatprep.subr.mxu0 0.0
    %880 = vmatpush1.msra.mxu0 0.0
    %881 = vmatprep.subr.mxu0 0.0
    %882 = vmatpush1.msra.mxu0 0.0
    %883 = vmatprep.mubr.f32.mxu0 0.0
    %884 = vmatmul.mubr.f32.gmra.mrb[0].mxu0 %v795
    %v885 = vpop.f32.mrb[0].mxu0
    %v886 = vadd.f32 %v817, %v885
    %v887 = vpop.f32.mrb[0].mxu0
    %888 = vdwg.mxu0
    %889 = vst [vmem:[#allocation13] sm:$0xff] %v886
    // Predicated region
    $region70: #{tpu_custom_call.1} parent=1 // pred_check
      _
    $region71: #{tpu_custom_call.1} parent=1 // pred_check_branch
      %891 = sbr.rel (0) target = $region73
    $region72: #{tpu_custom_call.1} parent=1 // pred_region
      %s893 = ssub.s32 128, 128
      %894 = vsyncadd [#allocation4], %s893
      %s896 = sshll.u32 [#allocation13], 4
      %s897 = int_to_ptr.vmem [resolvable:$true] %s896
      %899 = dma.vmem_to_hbm [thread:$0]  %s897, 128, %s11, [#allocation4]
    $region73: #{tpu_custom_call.1} parent=1 // pred_fallthru
      _
    // Predicated region
    $region74: #{tpu_custom_call.1} parent=1 // pred_check
      _
    $region75: #{tpu_custom_call.1} parent=1 // pred_check_branch
      %901 = sbr.rel (0) target = $region77
    $region76: #{tpu_custom_call.1} parent=1 // pred_region
      %902 = dma.done [#allocation4], 128
    $region77: #{tpu_custom_call.1} parent=1 // pred_fallthru
      _
    %903 = vsyncpa [#allocation3], 1
    %904 = vsyncpa [#allocation6], 1
    %905 = vsyncpa [#allocation9], 1
    %906 = vsyncpa [#allocation12], 1
    %907 = vsyncpa [#allocation4], 1

</llo_original>
